<compile_context>
chip_gen: v7x
topology: tpu7x:2x2x1
jax: 0.10.0
libtpu: 0.0.40
codegen_flags: <defaults>
</compile_context>

<pallas_src>
import math

import jax
import jax.numpy as jnp
from jax import lax
from jax.experimental import pallas as pl
from jax.experimental.pallas import tpu as pltpu


def _flash_attention_kernel(xq_ref, xkv_ref, wq_ref, wk_ref, wv_ref, o_ref,
                            m_scr, l_scr, acc_scr):
    # xq_ref  : (C_in, TQ)   query-side slice of x
    # xkv_ref : (C_in, TKV)  key/value-side slice of x
    # wq/wk/wv: (C_out, C_in)
    # o_ref   : (C_out, TQ)
    # m_scr/l_scr : (TQ, 1) f32 running max / denominator
    # acc_scr     : (TQ, C_out) f32 running numerator
    kv_idx = pl.program_id(2)

    @pl.when(kv_idx == 0)
    def _init():
        m_scr[...] = jnp.full_like(m_scr, -jnp.inf)
        l_scr[...] = jnp.zeros_like(l_scr)
        acc_scr[...] = jnp.zeros_like(acc_scr)

    c_out = wq_ref.shape[0]
    scale = 1.0 / math.sqrt(float(c_out))  # matches sqrt(q.shape[-2]) in the module

    xq = xq_ref[...]    # (C_in, TQ)  f32
    xkv = xkv_ref[...]  # (C_in, TKV) f32

    # 1x1 convs (bias=False). Contraction dim (C_in) is tiny, so recomputing these
    # projections per grid step is negligible next to the O(TQ*TKV) attention work.
    q = jnp.dot(wq_ref[...], xq, preferred_element_type=jnp.float32) * scale    # (C_out, TQ)
    k = jnp.dot(wk_ref[...], xkv, preferred_element_type=jnp.float32)           # (C_out, TKV)
    # v^T directly in (TKV, C_out) layout so P@V below is a standard matmul.
    v_t = lax.dot_general(xkv, wv_ref[...], (((0,), (1,)), ((), ())),
                          preferred_element_type=jnp.float32)                   # (TKV, C_out)

    # energies s[i, j] = sum_c q[c, i] * k[c, j]  (bf16 operands, f32 accumulation)
    s = lax.dot_general(q.astype(jnp.bfloat16), k.astype(jnp.bfloat16),
                        (((0,), (0,)), ((), ())),
                        preferred_element_type=jnp.float32)                     # (TQ, TKV)

    # Online softmax update (element-wise math kept in f32 for portability incl. v5e).
    m_prev = m_scr[...]                                          # (TQ, 1)
    m_new = jnp.maximum(m_prev, jnp.max(s, axis=-1, keepdims=True))
    alpha = jnp.exp(m_prev - m_new)                              # (TQ, 1)
    p = jnp.exp(s - m_new)                                       # (TQ, TKV)

    l_scr[...] = alpha * l_scr[...] + jnp.sum(p, axis=-1, keepdims=True)
    acc_scr[...] = alpha * acc_scr[...] + jnp.dot(
        p.astype(jnp.bfloat16), v_t.astype(jnp.bfloat16),
        preferred_element_type=jnp.float32)                      # (TQ, C_out)
    m_scr[...] = m_new

    @pl.when(kv_idx == pl.num_programs(2) - 1)
    def _finalize():
        inv_l = pl.reciprocal(l_scr[...], approx=True)           # EUP vrcp, (TQ, 1)
        out = acc_scr[...] * inv_l                               # (TQ, C_out)
        # Cheap O(C_out*TQ) transpose -> lane-dense (C_out, TQ) store.
        o_ref[...] = out.T.astype(o_ref.dtype)


def attention_forward(x, wq, wk, wv, *, tq=None, tkv=None):
    """x: (B, C_in, N) float32; wq/wk/wv: (C_out, C_in). Returns (B, C_out, N)."""
    B, C_in, N = x.shape
    C_out, c_in_w = wq.shape
    assert c_in_w == C_in and wk.shape == wq.shape and wv.shape == wq.shape

    def _pick(t):
        if t is not None:
            return t
        # (512, 512) f32 tiles are ~1 MiB each for s/p; fits comfortably in scoped VMEM
        # on v5e/v6e/v7x with double-buffering headroom.
        return N if N <= 512 else 512

    tq, tkv = _pick(tq), _pick(tkv)
    assert N % tq == 0 and N % tkv == 0, "N must be divisible by the tile sizes"
    assert tq == N or tq % 128 == 0, "query tile must be N or a multiple of 128"
    assert tkv == N or tkv % 128 == 0, "kv tile must be N or a multiple of 128"

    grid = (B, N // tq, N // tkv)
    w_spec = pl.BlockSpec((C_out, C_in), lambda b, qi, ki: (0, 0))

    return pl.pallas_call(
        _flash_attention_kernel,
        out_shape=jax.ShapeDtypeStruct((B, C_out, N), x.dtype),
        grid_spec=pltpu.PrefetchScalarGridSpec(
            num_scalar_prefetch=0,
            grid=grid,
            in_specs=[
                pl.BlockSpec((None, C_in, tq), lambda b, qi, ki: (b, 0, qi)),   # x (query tiles)
                pl.BlockSpec((None, C_in, tkv), lambda b, qi, ki: (b, 0, ki)),  # x (kv tiles)
                w_spec, w_spec, w_spec,
            ],
            out_specs=pl.BlockSpec((None, C_out, tq), lambda b, qi, ki: (b, 0, qi)),
            scratch_shapes=[
                pltpu.VMEM((tq, 1), jnp.float32),      # running max m
                pltpu.VMEM((tq, 1), jnp.float32),      # running denominator l
                pltpu.VMEM((tq, C_out), jnp.float32),  # running numerator acc
            ],
        ),
        compiler_params=pltpu.CompilerParams(
            dimension_semantics=("parallel", "parallel", "arbitrary"),
            vmem_limit_bytes=32 * 1024 * 1024,
        ),
    )(x, x, wq, wk, wv)


def _reference(x, wq, wk, wv):
    # Pure-JAX f32 reference mirroring the PyTorch forward.
    q = jnp.einsum("oc,bcn->bon", wq, x)
    k = jnp.einsum("oc,bcn->bon", wk, x)
    v = jnp.einsum("oc,bcn->bon", wv, x)
    energy = jnp.einsum("bcn,bcm->bnm", q, k)
    attn = jax.nn.softmax(energy / math.sqrt(q.shape[-2]), axis=-1)
    out = jnp.einsum("bnm,bcm->bnc", attn, v)
    return jnp.transpose(out, (0, 2, 1))  # (B, C_out, N)


def _make_inputs(key, B, C_in, C_out, N):
    kx, kq, kk, kv = jax.random.split(key, 4)
    x = jax.random.normal(kx, (B, C_in, N), dtype=jnp.float32)
    wq = jax.random.normal(kq, (C_out, C_in), dtype=jnp.float32) / math.sqrt(C_in)
    wk = jax.random.normal(kk, (C_out, C_in), dtype=jnp.float32) / math.sqrt(C_in)
    wv = jax.random.normal(kv, (C_out, C_in), dtype=jnp.float32) / math.sqrt(C_in)
    return x, wq, wk, wv


if __name__ == "__main__":
    key = jax.random.PRNGKey(0)
    k1, k2 = jax.random.split(key)

    # Case 1: module defaults (input_dim=output_dim=3), tiny N -> single-tile path.
    x, wq, wk, wv = _make_inputs(k1, 2, 3, 3, 16)
    out = jax.block_until_ready(attention_forward(x, wq, wk, wv))
    ref = _reference(x, wq, wk, wv)
    assert out.shape == ref.shape
    err = float(jnp.max(jnp.abs(out - ref)))
    assert err < 5e-2, f"case1 mismatch vs reference (max abs err {err})"

    # Case 2: multi-tile grid -> exercises the online-softmax (flash) accumulation.
    x, wq, wk, wv = _make_inputs(k2, 2, 4, 4, 256)
    out = jax.block_until_ready(attention_forward(x, wq, wk, wv, tq=128, tkv=128))
    ref = _reference(x, wq, wk, wv)
    assert out.shape == ref.shape
    err = float(jnp.max(jnp.abs(out - ref)))
    assert err < 5e-2, f"case2 mismatch vs reference (max abs err {err})"

    print("KERNEL_OK")
</pallas_src>

<mosaic_0001>
module attributes {stable_mosaic.version = 11 : i64} {
  func.func @_flash_attention_kernel(%arg0: i32, %arg1: i32, %arg2: i32, %arg3: memref<1x3x16xf32, #tpu.memory_space<vmem>>, %arg4: memref<1x3x16xf32, #tpu.memory_space<vmem>>, %arg5: memref<3x3xf32, #tpu.memory_space<vmem>>, %arg6: memref<3x3xf32, #tpu.memory_space<vmem>>, %arg7: memref<3x3xf32, #tpu.memory_space<vmem>>, %arg8: memref<1x3x16xf32, #tpu.memory_space<vmem>>, %arg9: memref<16x1xf32, #tpu.memory_space<vmem>>, %arg10: memref<16x1xf32, #tpu.memory_space<vmem>>, %arg11: memref<16x3xf32, #tpu.memory_space<vmem>>) attributes {dimension_semantics = [#tpu.dimension_semantics<parallel>, #tpu.dimension_semantics<parallel>, #tpu.dimension_semantics<arbitrary>], iteration_bounds = array<i64: 2, 1, 1>, scalar_prefetch = 0 : i64, scratch_operands = 3 : i64, tpu.core_type = #tpu.core_type<tc>, window_params = [{transform_indices = @transform_0, window_bounds = array<i64: 1, 3, 16>}, {transform_indices = @transform_1, window_bounds = array<i64: 1, 3, 16>}, {pipeline_mode = #tpu.pipeline_mode<synchronous>, transform_indices = @transform_2, window_bounds = array<i64: 3, 3>}, {pipeline_mode = #tpu.pipeline_mode<synchronous>, transform_indices = @transform_3, window_bounds = array<i64: 3, 3>}, {pipeline_mode = #tpu.pipeline_mode<synchronous>, transform_indices = @transform_4, window_bounds = array<i64: 3, 3>}, {transform_indices = @transform_5, window_bounds = array<i64: 1, 3, 16>}]} {
    %c0_i32 = arith.constant 0 : i32
    %0 = arith.cmpi eq, %arg2, %c0_i32 : i32
    %1 = arith.extui %0 : i1 to i32
    %c0_i32_0 = arith.constant 0 : i32
    %2 = arith.cmpi ne, %1, %c0_i32_0 : i32
    scf.if %2 {
      %cst_33 = arith.constant 0xFF800000 : f32
      %45 = vector.broadcast %cst_33 : f32 to vector<16x1xf32>
      %c0_34 = arith.constant 0 : index
      %c0_35 = arith.constant 0 : index
      %46 = vector.load %arg9[%c0_34, %c0_35] : memref<16x1xf32, #tpu.memory_space<vmem>>, vector<16x1xf32>
      tpu.vector_store %arg9[%c0_34, %c0_35], %45 {strides = array<i32>} : memref<16x1xf32, #tpu.memory_space<vmem>>, vector<16x1xf32>,
      %cst_36 = arith.constant 0.000000e+00 : f32
      %47 = vector.broadcast %cst_36 : f32 to vector<16x1xf32>
      %c0_37 = arith.constant 0 : index
      %c0_38 = arith.constant 0 : index
      %48 = vector.load %arg10[%c0_37, %c0_38] : memref<16x1xf32, #tpu.memory_space<vmem>>, vector<16x1xf32>
      tpu.vector_store %arg10[%c0_37, %c0_38], %47 {strides = array<i32>} : memref<16x1xf32, #tpu.memory_space<vmem>>, vector<16x1xf32>,
      %cst_39 = arith.constant 0.000000e+00 : f32
      %49 = vector.broadcast %cst_39 : f32 to vector<16x3xf32>
      %c0_40 = arith.constant 0 : index
      %c0_41 = arith.constant 0 : index
      %50 = vector.load %arg11[%c0_40, %c0_41] : memref<16x3xf32, #tpu.memory_space<vmem>>, vector<16x3xf32>
      tpu.vector_store %arg11[%c0_40, %c0_41], %49 {strides = array<i32>} : memref<16x3xf32, #tpu.memory_space<vmem>>, vector<16x3xf32>,
    } else {
    }
    %c0 = arith.constant 0 : index
    %c0_1 = arith.constant 0 : index
    %c0_2 = arith.constant 0 : index
    %3 = vector.load %arg3[%c0, %c0_1, %c0_2] : memref<1x3x16xf32, #tpu.memory_space<vmem>>, vector<1x3x16xf32>
    %4 = vector.shape_cast %3 : vector<1x3x16xf32> to vector<3x16xf32>
    %c0_3 = arith.constant 0 : index
    %c0_4 = arith.constant 0 : index
    %c0_5 = arith.constant 0 : index
    %5 = vector.load %arg4[%c0_3, %c0_4, %c0_5] : memref<1x3x16xf32, #tpu.memory_space<vmem>>, vector<1x3x16xf32>
    %6 = vector.shape_cast %5 : vector<1x3x16xf32> to vector<3x16xf32>
    %c0_6 = arith.constant 0 : index
    %c0_7 = arith.constant 0 : index
    %7 = vector.load %arg5[%c0_6, %c0_7] : memref<3x3xf32, #tpu.memory_space<vmem>>, vector<3x3xf32>
    %cst = arith.constant dense<0.000000e+00> : vector<3x16xf32>
    %8 = tpu.matmul %7, %4, %cst {dimension_numbers = #tpu.dot_dimension_numbers<[1], [0], [0], [1], [0, 0, 1, 1], [], []>} : vector<3x3xf32>, vector<3x16xf32>, vector<3x16xf32> -> vector<3x16xf32>
    %cst_8 = arith.constant 0.577350259 : f32
    %9 = vector.broadcast %cst_8 : f32 to vector<3x16xf32>
    %10 = arith.mulf %8, %9 : vector<3x16xf32>
    %c0_9 = arith.constant 0 : index
    %c0_10 = arith.constant 0 : index
    %11 = vector.load %arg6[%c0_9, %c0_10] : memref<3x3xf32, #tpu.memory_space<vmem>>, vector<3x3xf32>
    %cst_11 = arith.constant dense<0.000000e+00> : vector<3x16xf32>
    %12 = tpu.matmul %11, %6, %cst_11 {dimension_numbers = #tpu.dot_dimension_numbers<[1], [0], [0], [1], [0, 0, 1, 1], [], []>} : vector<3x3xf32>, vector<3x16xf32>, vector<3x16xf32> -> vector<3x16xf32>
    %c0_12 = arith.constant 0 : index
    %c0_13 = arith.constant 0 : index
    %13 = vector.load %arg7[%c0_12, %c0_13] : memref<3x3xf32, #tpu.memory_space<vmem>>, vector<3x3xf32>
    %cst_14 = arith.constant dense<0.000000e+00> : vector<16x3xf32>
    %14 = tpu.matmul %6, %13, %cst_14 {dimension_numbers = #tpu.dot_dimension_numbers<[0], [1], [1], [0], [0, 1, 1, 0], [], []>} : vector<3x16xf32>, vector<3x3xf32>, vector<16x3xf32> -> vector<16x3xf32>
    %15 = arith.truncf %10 : vector<3x16xf32> to vector<3x16xbf16>
    %16 = arith.truncf %12 : vector<3x16xf32> to vector<3x16xbf16>
    %cst_15 = arith.constant dense<0.000000e+00> : vector<16x16xf32>
    %17 = tpu.matmul %15, %16, %cst_15 {dimension_numbers = #tpu.dot_dimension_numbers<[0], [0], [1], [1], [0, 1, 1, 1], [], []>} : vector<3x16xbf16>, vector<3x16xbf16>, vector<16x16xf32> -> vector<16x16xf32>
    %c0_16 = arith.constant 0 : index
    %c0_17 = arith.constant 0 : index
    %18 = vector.load %arg9[%c0_16, %c0_17] : memref<16x1xf32, #tpu.memory_space<vmem>>, vector<16x1xf32>
    %cst_18 = arith.constant dense<0xFF800000> : vector<16xf32>
    %19 = vector.multi_reduction <maximumf>, %17, %cst_18 [1] : vector<16x16xf32> to vector<16xf32>
    %20 = vector.shape_cast %19 : vector<16xf32> to vector<16x1xf32>
    %21 = arith.maximumf %18, %20 : vector<16x1xf32>
    %22 = arith.subf %18, %21 : vector<16x1xf32>
    %23 = math.exp %22 : vector<16x1xf32>
    %24 = vector.broadcast %21 : vector<16x1xf32> to vector<16x16xf32>
    %25 = arith.subf %17, %24 : vector<16x16xf32>
    %26 = math.exp %25 : vector<16x16xf32>
    %c0_19 = arith.constant 0 : index
    %c0_20 = arith.constant 0 : index
    %27 = vector.load %arg10[%c0_19, %c0_20] : memref<16x1xf32, #tpu.memory_space<vmem>>, vector<16x1xf32>
    %28 = arith.mulf %23, %27 : vector<16x1xf32>
    %cst_21 = arith.constant dense<0.000000e+00> : vector<16xf32>
    %29 = vector.multi_reduction <add>, %26, %cst_21 [1] : vector<16x16xf32> to vector<16xf32>
    %30 = vector.shape_cast %29 : vector<16xf32> to vector<16x1xf32>
    %31 = arith.addf %28, %30 : vector<16x1xf32>
    %c0_22 = arith.constant 0 : index
    %c0_23 = arith.constant 0 : index
    %32 = vector.load %arg10[%c0_22, %c0_23] : memref<16x1xf32, #tpu.memory_space<vmem>>, vector<16x1xf32>
    tpu.vector_store %arg10[%c0_22, %c0_23], %31 {strides = array<i32>} : memref<16x1xf32, #tpu.memory_space<vmem>>, vector<16x1xf32>,
    %c0_24 = arith.constant 0 : index
    %c0_25 = arith.constant 0 : index
    %33 = vector.load %arg11[%c0_24, %c0_25] : memref<16x3xf32, #tpu.memory_space<vmem>>, vector<16x3xf32>
    %34 = vector.broadcast %23 : vector<16x1xf32> to vector<16x3xf32>
    %35 = arith.mulf %34, %33 : vector<16x3xf32>
    %36 = arith.truncf %26 : vector<16x16xf32> to vector<16x16xbf16>
    %37 = arith.truncf %14 : vector<16x3xf32> to vector<16x3xbf16>
    %cst_26 = arith.constant dense<0.000000e+00> : vector<16x3xf32>
    %38 = tpu.matmul %36, %37, %cst_26 {dimension_numbers = #tpu.dot_dimension_numbers<[1], [0], [0], [1], [0, 0, 1, 1], [], []>} : vector<16x16xbf16>, vector<16x3xbf16>, vector<16x3xf32> -> vector<16x3xf32>
    %39 = arith.addf %35, %38 : vector<16x3xf32>
    %c0_27 = arith.constant 0 : index
    %c0_28 = arith.constant 0 : index
    %40 = vector.load %arg11[%c0_27, %c0_28] : memref<16x3xf32, #tpu.memory_space<vmem>>, vector<16x3xf32>
    tpu.vector_store %arg11[%c0_27, %c0_28], %39 {strides = array<i32>} : memref<16x3xf32, #tpu.memory_space<vmem>>, vector<16x3xf32>,
    %c0_29 = arith.constant 0 : index
    %c0_30 = arith.constant 0 : index
    %41 = vector.load %arg9[%c0_29, %c0_30] : memref<16x1xf32, #tpu.memory_space<vmem>>, vector<16x1xf32>
    tpu.vector_store %arg9[%c0_29, %c0_30], %21 {strides = array<i32>} : memref<16x1xf32, #tpu.memory_space<vmem>>, vector<16x1xf32>,
    %c0_i32_31 = arith.constant 0 : i32
    %42 = arith.cmpi eq, %arg2, %c0_i32_31 : i32
    %43 = arith.extui %42 : i1 to i32
    %c0_i32_32 = arith.constant 0 : i32
    %44 = arith.cmpi ne, %43, %c0_i32_32 : i32
    scf.if %44 {
      %c0_33 = arith.constant 0 : index
      %c0_34 = arith.constant 0 : index
      %45 = vector.load %arg10[%c0_33, %c0_34] : memref<16x1xf32, #tpu.memory_space<vmem>>, vector<16x1xf32>
      %46 = tpu.reciprocal %45 {approx = true} : vector<16x1xf32> -> vector<16x1xf32>
      %c0_35 = arith.constant 0 : index
      %c0_36 = arith.constant 0 : index
      %47 = vector.load %arg11[%c0_35, %c0_36] : memref<16x3xf32, #tpu.memory_space<vmem>>, vector<16x3xf32>
      %48 = vector.broadcast %46 : vector<16x1xf32> to vector<16x3xf32>
      %49 = arith.mulf %47, %48 : vector<16x3xf32>
      %50 = tpu.transpose %49, [1, 0] : vector<16x3xf32> -> vector<3x16xf32>
      %c0_37 = arith.constant 0 : index
      %c0_38 = arith.constant 0 : index
      %c0_39 = arith.constant 0 : index
      %51 = vector.load %arg8[%c0_37, %c0_38, %c0_39] : memref<1x3x16xf32, #tpu.memory_space<vmem>>, vector<1x3x16xf32>
      %52 = vector.shape_cast %51 : vector<1x3x16xf32> to vector<3x16xf32>
      %53 = vector.shape_cast %50 : vector<3x16xf32> to vector<1x3x16xf32>
      tpu.vector_store %arg8[%c0_37, %c0_38, %c0_39], %53 {strides = array<i32>} : memref<1x3x16xf32, #tpu.memory_space<vmem>>, vector<1x3x16xf32>,
    } else {
    }
    return
  }
  func.func @transform_0(%arg0: i32, %arg1: i32, %arg2: i32) -> (i32, i32, i32) {
    %c0_i32 = arith.constant 0 : i32
    %c0_i32_0 = arith.constant 0 : i32
    return %arg0, %c0_i32, %arg1 : i32, i32, i32
  }
  func.func @transform_1(%arg0: i32, %arg1: i32, %arg2: i32) -> (i32, i32, i32) {
    %c0_i32 = arith.constant 0 : i32
    %c0_i32_0 = arith.constant 0 : i32
    return %arg0, %c0_i32, %arg2 : i32, i32, i32
  }
  func.func @transform_2(%arg0: i32, %arg1: i32, %arg2: i32) -> (i32, i32) {
    %c0_i32 = arith.constant 0 : i32
    %c0_i32_0 = arith.constant 0 : i32
    %c0_i32_1 = arith.constant 0 : i32
    return %c0_i32, %c0_i32_0 : i32, i32
  }
  func.func @transform_3(%arg0: i32, %arg1: i32, %arg2: i32) -> (i32, i32) {
    %c0_i32 = arith.constant 0 : i32
    %c0_i32_0 = arith.constant 0 : i32
    %c0_i32_1 = arith.constant 0 : i32
    return %c0_i32, %c0_i32_0 : i32, i32
  }
  func.func @transform_4(%arg0: i32, %arg1: i32, %arg2: i32) -> (i32, i32) {
    %c0_i32 = arith.constant 0 : i32
    %c0_i32_0 = arith.constant 0 : i32
    %c0_i32_1 = arith.constant 0 : i32
    return %c0_i32, %c0_i32_0 : i32, i32
  }
  func.func @transform_5(%arg0: i32, %arg1: i32, %arg2: i32) -> (i32, i32, i32) {
    %c0_i32 = arith.constant 0 : i32
    %c0_i32_0 = arith.constant 0 : i32
    return %arg0, %c0_i32, %arg1 : i32, i32, i32
  }
}

</mosaic_0001>

<llo_original>
// kernel: tpu_custom_call.1
$region0: #{tpu_custom_call.1}
  #allocation0 [shape = 'u32[]', space=smem, size = 0x4, offset = 0x4, fixed_abs, tag = 'smem constant byte address 0x4 - core index']
  #allocation1 [shape = 'u32[144,128]{1,0:T(1,128)}', space=vmem, size = 0x12000, scoped, tag = 'internal scratch']
  #allocation2 [shape = 'f32[16,1]{1,0:T(8,128)}', space=vmem, size = 0x2000, scoped, tag = 'scratch operand']
  #allocation3 [shape = 'f32[16,1]{1,0:T(8,128)}', space=vmem, size = 0x2000, scoped, tag = 'scratch operand']
  #allocation4 [shape = 'f32[16,3]{1,0:T(8,128)}', space=vmem, size = 0x2000, scoped, tag = 'scratch operand']
  %s0 = inlined_call_operand.vmem [shape: f32[2,3,16], index: 0, kind: input, shape index: {}]
  %s1 = inlined_call_operand.vmem [shape: f32[2,3,16], index: 1, kind: input, shape index: {}]
  %s2 = inlined_call_operand.vmem [shape: f32[3,3], index: 2, kind: input, shape index: {}]
  %s3 = inlined_call_operand.vmem [shape: f32[3,3], index: 3, kind: input, shape index: {}]
  %s4 = inlined_call_operand.vmem [shape: f32[3,3], index: 4, kind: input, shape index: {}]
  %s5 = inlined_call_operand.vmem [shape: f32[2,3,16], index: 5, kind: output, shape index: {}]
  %s6 = sld [smem:[#allocation0]]
  $region61: #{tpu_custom_call.1} parent=0
    _
  %s8 = ssub.s32 1, %s6
  %s9 = scalar_select 0, %s8, %s6
  loop: start=0, step=1, limit=4
  $region2: #{tpu_custom_call.1} parent=0 // loop_pre_header
    _
  $region3: #{tpu_custom_call.1} parent=0 // loop_header
    %s11 = sphi 0, %s15
    %p12 = scmp.ge.s32.totalorder %s11, 4
    %s18 = sphi 0, %s37
    %s19 = sphi 0, %s33
    %s20 = sphi 0, %s29
    %s21 = sphi 0, %s18
    %s22 = sphi 0, %s19
    %s23 = sphi 0, %s20
    %s24 = sphi 0, %s21
    %s25 = sphi 0, %s22
    %s26 = sphi 0, %s23
    %s42 = sphi 0, %s44
    %s45 = sphi 0, %s42
    %s46 = sphi 0, %s45
    %s62 = sphi 0, %s46
    %s70 = sphi 0, %s72
    %s73 = sphi 0, %s70
    %s74 = sphi 0, %s73
    %s90 = sphi 0, %s74
    %s94 = sphi 0, %s94
    %s96 = sphi 0, %s94
    %s97 = sphi 0, %s96
    %s111 = sphi 0, %s97
    %s115 = sphi 0, %s115
    %s117 = sphi 0, %s115
    %s118 = sphi 0, %s117
    %s132 = sphi 0, %s118
    %s136 = sphi 0, %s136
    %s138 = sphi 0, %s136
    %s139 = sphi 0, %s138
    %s153 = sphi 0, %s139
    %s161 = sphi 0, %s163
    %s164 = sphi 0, %s161
    %s165 = sphi 0, %s164
    %s181 = sphi 0, %s165
  $region4: #{tpu_custom_call.1} parent=0 // loop_header_branch
    %14 = sbr.rel (%p12) target = $region8
  $region5: #{tpu_custom_call.1} parent=0 // loop_body
    %s16 = ssub.s32 %s11, 1
    %s17 = ssub.s32 %s11, 2
    %s27 = sadd.s32 1, %s20
    %p28 = scmp.ge.s32.totalorder %s27, 1
    %s29 = scalar_select %p28, 0, %s27
    %s30 = sadd.s32 1, %s19
    %s31 = scalar_select %p28, %s30, %s19
    %p32 = scmp.ge.s32.totalorder %s31, 1
    %s33 = scalar_select %p32, 0, %s31
    %s34 = sadd.s32 1, %s18
    %s35 = scalar_select %p32, %s34, %s18
    %p36 = scmp.ge.s32.totalorder %s35, 2
    %s37 = scalar_select %p36, 0, %s35
    %s38 = ssub.s32 %s18, %s37
    %s39 = ssub.s32 %s19, %s33
    %s40 = sor.u32 %s38, %s39
    %p41 = scmp.eq.s32.totalorder %s40, 0
    %s43 = sadd.s32 %s42, 1
    %s44 = scalar_select %p41, %s42, %s43
    %p47 = pneg %p41
    %p48 = scmp.eq.s32.totalorder %s11, 1
    %p49 = por %p47, %p48
    %p50 = scmp.ne.s32.totalorder %s42, %s45
    %p51 = scmp.eq.s32.totalorder %s11, 0
    %p52 = por %p50, %p51
    %p53 = scmp.ne.s32.totalorder %s42, %s45
    %p54 = scmp.eq.s32.totalorder %s16, 1
    %p55 = por %p53, %p54
    %p56 = scmp.ne.s32.totalorder %s45, %s46
    %p57 = scmp.eq.s32.totalorder %s16, 0
    %p58 = por %p56, %p57
    %p59 = scmp.ne.s32.totalorder %s45, %s46
    %p60 = scmp.eq.s32.totalorder %s17, 1
    %p61 = por %p59, %p60
    %p63 = scmp.ne.s32.totalorder %s46, %s62
    %p64 = scmp.eq.s32.totalorder %s17, 0
    %p65 = por %p63, %p64
    %s66 = ssub.s32 %s18, %s37
    %s67 = ssub.s32 %s20, %s29
    %s68 = sor.u32 %s66, %s67
    %p69 = scmp.eq.s32.totalorder %s68, 0
    %s71 = sadd.s32 %s70, 1
    %s72 = scalar_select %p69, %s70, %s71
    %p75 = pneg %p69
    %p76 = scmp.eq.s32.totalorder %s11, 1
    %p77 = por %p75, %p76
    %p78 = scmp.ne.s32.totalorder %s70, %s73
    %p79 = scmp.eq.s32.totalorder %s11, 0
    %p80 = por %p78, %p79
    %p81 = scmp.ne.s32.totalorder %s70, %s73
    %p82 = scmp.eq.s32.totalorder %s16, 1
    %p83 = por %p81, %p82
    %p84 = scmp.ne.s32.totalorder %s73, %s74
    %p85 = scmp.eq.s32.totalorder %s16, 0
    %p86 = por %p84, %p85
    %p87 = scmp.ne.s32.totalorder %s73, %s74
    %p88 = scmp.eq.s32.totalorder %s17, 1
    %p89 = por %p87, %p88
    %p91 = scmp.ne.s32.totalorder %s74, %s90
    %p92 = scmp.eq.s32.totalorder %s17, 0
    %p93 = por %p91, %p92
    %s95 = sadd.s32 %s94, 1
    %p98 = scmp.eq.s32.totalorder %s11, 1
    %p99 = scmp.ne.s32.totalorder %s94, %s96
    %p100 = scmp.eq.s32.totalorder %s11, 0
    %p101 = por %p99, %p100
    %p102 = scmp.ne.s32.totalorder %s94, %s96
    %p103 = scmp.eq.s32.totalorder %s16, 1
    %p104 = por %p102, %p103
    %p105 = scmp.ne.s32.totalorder %s96, %s97
    %p106 = scmp.eq.s32.totalorder %s16, 0
    %p107 = por %p105, %p106
    %p108 = scmp.ne.s32.totalorder %s96, %s97
    %p109 = scmp.eq.s32.totalorder %s17, 1
    %p110 = por %p108, %p109
    %p112 = scmp.ne.s32.totalorder %s97, %s111
    %p113 = scmp.eq.s32.totalorder %s17, 0
    %p114 = por %p112, %p113
    %s116 = sadd.s32 %s115, 1
    %p119 = scmp.eq.s32.totalorder %s11, 1
    %p120 = scmp.ne.s32.totalorder %s115, %s117
    %p121 = scmp.eq.s32.totalorder %s11, 0
    %p122 = por %p120, %p121
    %p123 = scmp.ne.s32.totalorder %s115, %s117
    %p124 = scmp.eq.s32.totalorder %s16, 1
    %p125 = por %p123, %p124
    %p126 = scmp.ne.s32.totalorder %s117, %s118
    %p127 = scmp.eq.s32.totalorder %s16, 0
    %p128 = por %p126, %p127
    %p129 = scmp.ne.s32.totalorder %s117, %s118
    %p130 = scmp.eq.s32.totalorder %s17, 1
    %p131 = por %p129, %p130
    %p133 = scmp.ne.s32.totalorder %s118, %s132
    %p134 = scmp.eq.s32.totalorder %s17, 0
    %p135 = por %p133, %p134
    %s137 = sadd.s32 %s136, 1
    %p140 = scmp.eq.s32.totalorder %s11, 1
    %p141 = scmp.ne.s32.totalorder %s136, %s138
    %p142 = scmp.eq.s32.totalorder %s11, 0
    %p143 = por %p141, %p142
    %p144 = scmp.ne.s32.totalorder %s136, %s138
    %p145 = scmp.eq.s32.totalorder %s16, 1
    %p146 = por %p144, %p145
    %p147 = scmp.ne.s32.totalorder %s138, %s139
    %p148 = scmp.eq.s32.totalorder %s16, 0
    %p149 = por %p147, %p148
    %p150 = scmp.ne.s32.totalorder %s138, %s139
    %p151 = scmp.eq.s32.totalorder %s17, 1
    %p152 = por %p150, %p151
    %p154 = scmp.ne.s32.totalorder %s139, %s153
    %p155 = scmp.eq.s32.totalorder %s17, 0
    %p156 = por %p154, %p155
    %s157 = ssub.s32 %s18, %s37
    %s158 = ssub.s32 %s19, %s33
    %s159 = sor.u32 %s157, %s158
    %p160 = scmp.eq.s32.totalorder %s159, 0
    %s162 = sadd.s32 %s161, 1
    %s163 = scalar_select %p160, %s161, %s162
    %p166 = pneg %p160
    %p167 = scmp.eq.s32.totalorder %s11, 1
    %p168 = por %p166, %p167
    %p169 = scmp.ne.s32.totalorder %s161, %s164
    %p170 = scmp.eq.s32.totalorder %s11, 0
    %p171 = por %p169, %p170
    %p172 = scmp.ne.s32.totalorder %s161, %s164
    %p173 = scmp.eq.s32.totalorder %s16, 1
    %p174 = por %p172, %p173
    %p175 = scmp.ne.s32.totalorder %s164, %s165
    %p176 = scmp.eq.s32.totalorder %s16, 0
    %p177 = por %p175, %p176
    %p178 = scmp.ne.s32.totalorder %s164, %s165
    %p179 = scmp.eq.s32.totalorder %s17, 1
    %p180 = por %p178, %p179
    %p182 = scmp.ne.s32.totalorder %s165, %s181
    %p183 = scmp.eq.s32.totalorder %s17, 0
    %p184 = por %p182, %p183
    %p185 = scmp.le.s32.totalorder 1, %s11
    %p186 = scmp.lt.s32.totalorder %s11, 3
    %p187 = pnand %p185, %p186
    %p188 = pneg %p187
    // Predicated region
    $region9: #{tpu_custom_call.1} parent=5 // pred_check
      _
    $region10: #{tpu_custom_call.1} parent=5 // pred_check_branch
      %190 = sbr.rel (%p187) target = $region12
    $region11: #{tpu_custom_call.1} parent=5 // pred_region
      %s191 = ssub.s32 %s11, 1
      // Predicated region
      $region13: #{tpu_custom_call.1} parent=11 // pred_check
        %p192 = pneg %p107
      $region14: #{tpu_custom_call.1} parent=11 // pred_check_branch
        %194 = sbr.rel (%p192) target = $region16
      $region15: #{tpu_custom_call.1} parent=11 // pred_region
        _
      $region16: #{tpu_custom_call.1} parent=11 // pred_fallthru
        _
      // Predicated region
      $region17: #{tpu_custom_call.1} parent=11 // pred_check
        %p195 = pneg %p128
      $region18: #{tpu_custom_call.1} parent=11 // pred_check_branch
        %197 = sbr.rel (%p195) target = $region20
      $region19: #{tpu_custom_call.1} parent=11 // pred_region
        _
      $region20: #{tpu_custom_call.1} parent=11 // pred_fallthru
        _
      // Predicated region
      $region21: #{tpu_custom_call.1} parent=11 // pred_check
        %p198 = pneg %p149
      $region22: #{tpu_custom_call.1} parent=11 // pred_check_branch
        %200 = sbr.rel (%p198) target = $region24
      $region23: #{tpu_custom_call.1} parent=11 // pred_region
        _
      $region24: #{tpu_custom_call.1} parent=11 // pred_fallthru
        _
    $region12: #{tpu_custom_call.1} parent=5 // pred_fallthru
      _
    %p201 = scmp.lt.s32.totalorder %s11, 2
    // Predicated region
    $region25: #{tpu_custom_call.1} parent=5 // pred_check
      %p202 = pneg %p201
    $region26: #{tpu_custom_call.1} parent=5 // pred_check_branch
      %204 = sbr.rel (%p202) target = $region28
    $region27: #{tpu_custom_call.1} parent=5 // pred_region
      // Predicated region
      $region29: #{tpu_custom_call.1} parent=27 // pred_check
        %p205 = pneg %p52
      $region30: #{tpu_custom_call.1} parent=27 // pred_check_branch
        %207 = sbr.rel (%p205) target = $region32
      $region31: #{tpu_custom_call.1} parent=27 // pred_region
        %p208 = scmp.lt.s32.totalorder %s18, 1
        %s209 = scalar_select %p208, %s18, 1
        %p210 = scmp.lt.s32.totalorder %s19, 0
        %s211 = scalar_select %p210, %s19, 0
        %s212 = sadd.s32 %s211, %s209
        %s213 = smul.addr %s212, 4
        %s214 = scalar_lea.vmem %s0, %s213
      $region32: #{tpu_custom_call.1} parent=27 // pred_fallthru
        _
      // Predicated region
      $region33: #{tpu_custom_call.1} parent=27 // pred_check
        %p215 = pneg %p80
      $region34: #{tpu_custom_call.1} parent=27 // pred_check_branch
        %217 = sbr.rel (%p215) target = $region36
      $region35: #{tpu_custom_call.1} parent=27 // pred_region
        %p218 = scmp.lt.s32.totalorder %s18, 1
        %s219 = scalar_select %p218, %s18, 1
        %p220 = scmp.lt.s32.totalorder %s20, 0
        %s221 = scalar_select %p220, %s20, 0
        %s222 = sadd.s32 %s221, %s219
        %s223 = smul.addr %s222, 4
        %s224 = scalar_lea.vmem %s1, %s223
      $region36: #{tpu_custom_call.1} parent=27 // pred_fallthru
        _
    $region28: #{tpu_custom_call.1} parent=5 // pred_fallthru
      _
    %p225 = scmp.le.s32.totalorder 1, %s11
    %p226 = scmp.lt.s32.totalorder %s11, 3
    %p227 = pnand %p225, %p226
    %p228 = pneg %p227
    // Predicated region
    $region37: #{tpu_custom_call.1} parent=5 // pred_check
      _
    $region38: #{tpu_custom_call.1} parent=5 // pred_check_branch
      %230 = sbr.rel (%p227) target = $region40
    $region39: #{tpu_custom_call.1} parent=5 // pred_region
      %s231 = ssub.s32 %s11, 1
      %p232 = scmp.lt.s32.totalorder %s21, 1
      %s233 = scalar_select %p232, %s21, 1
      %p234 = scmp.lt.s32.totalorder %s22, 0
      %s235 = scalar_select %p234, %s22, 0
      %s236 = sadd.s32 %s235, %s233
      %s237 = smul.addr %s236, 4
      %s238 = scalar_lea.vmem %s0, %s237
      %p239 = pneg %p58
      %p240 = pneg %p55
      %p241 = scmp.lt.s32.totalorder %s21, 1
      %s242 = scalar_select %p241, %s21, 1
      %p243 = scmp.lt.s32.totalorder %s23, 0
      %s244 = scalar_select %p243, %s23, 0
      %s245 = sadd.s32 %s244, %s242
      %s246 = smul.addr %s245, 4
      %s247 = scalar_lea.vmem %s1, %s246
      %p248 = pneg %p86
      %p249 = pneg %p83
      %p250 = pneg %p107
      %p251 = pneg %p104
      %p252 = pneg %p128
      %p253 = pneg %p125
      %p254 = pneg %p149
      %p255 = pneg %p146
      %p256 = pneg %p177
      %p257 = pneg %p174
      %p258 = scmp.lt.s32.totalorder %s21, 1
      %s259 = scalar_select %p258, %s21, 1
      %p260 = scmp.lt.s32.totalorder %s22, 0
      %s261 = scalar_select %p260, %s22, 0
      %s262 = sadd.s32 %s261, %s259
      %s263 = smul.addr %s262, 4
      %s264 = scalar_lea.vmem %s5, %s263
      %p265 = scmp.lt.s32.totalorder %s21, 1
      %s266 = scalar_select %p265, %s21, 1
      %p267 = scmp.lt.s32.totalorder %s22, 0
      %s268 = scalar_select %p267, %s22, 0
      %s269 = sadd.s32 %s268, %s266
      %s270 = smul.addr %s269, 4
      %s271 = scalar_lea.vmem %s0, %s270
      %p272 = scmp.lt.s32.totalorder %s21, 1
      %s273 = scalar_select %p272, %s21, 1
      %p274 = scmp.lt.s32.totalorder %s23, 0
      %s275 = scalar_select %p274, %s23, 0
      %s276 = sadd.s32 %s275, %s273
      %s277 = smul.addr %s276, 4
      %s278 = scalar_lea.vmem %s1, %s277
      %p279 = scmp.lt.s32.totalorder %s21, 1
      %s280 = scalar_select %p279, %s21, 1
      %p281 = scmp.lt.s32.totalorder %s22, 0
      %s282 = scalar_select %p281, %s22, 0
      %s283 = sadd.s32 %s282, %s280
      %s284 = smul.addr %s283, 4
      %s285 = scalar_lea.vmem %s5, %s284
      %p287 = scmp.eq.s32.totalorder %s23, 0
      // Predicated region
      $region41: #{tpu_custom_call.1} parent=39 // pred_check
        %p288 = pneg %p287
      $region42: #{tpu_custom_call.1} parent=39 // pred_check_branch
        %290 = sbr.rel (%p288) target = $region44
      $region43: #{tpu_custom_call.1} parent=39 // pred_region
        %vm291 = vcmask 7168
        %292 = vst.msk [vmem:[#allocation2] sm:$0xff] %vm291, -inf
        %293 = vst.msk [vmem:[#allocation2 + $0x8] sm:$0xff] %vm291, -inf
        %294 = vst.msk [vmem:[#allocation3] sm:$0xff] %vm291, 0.0
        %295 = vst.msk [vmem:[#allocation3 + $0x8] sm:$0xff] %vm291, 0.0
        %vm296 = vcmask 23552
        %297 = vst.msk [vmem:[#allocation4] sm:$0xff] %vm296, 0.0
        %298 = vst.msk [vmem:[#allocation4 + $0x8] sm:$0xff] %vm296, 0.0
      $region44: #{tpu_custom_call.1} parent=39 // pred_fallthru
        _
      %v299 = vld [vmem:[%s271] sm:$0x7]
      %v300 = vld [vmem:[%s278] sm:$0x7]
      %v301 = vld [vmem:[%s2] sm:$0x7]
      %vm302 = vcmask 23552
      %v304 = vsel %vm302, %v301, 0
      %vm306 = vcmask 1042432
      %v308 = vsel %vm306, %v299, 0
      %310 = vmatprep.subr.mxu0 0.0
      %311 = vmatpush1.msra.mxu0 %v308
      %312 = vmatprep.subr.mxu0 0.0
      %313 = vmatpush1.msra.mxu0 0.0
      %314 = vmatprep.subr.mxu0 0.0
      %315 = vmatpush1.msra.mxu0 0.0
      %316 = vmatprep.subr.mxu0 0.0
      %317 = vmatpush1.msra.mxu0 0.0
      %318 = vmatprep.subr.mxu0 0.0
      %319 = vmatpush1.msra.mxu0 0.0
      %320 = vmatprep.subr.mxu0 0.0
      %321 = vmatpush1.msra.mxu0 0.0
      %322 = vmatprep.subr.mxu0 0.0
      %323 = vmatpush1.msra.mxu0 0.0
      %324 = vmatprep.subr.mxu0 0.0
      %325 = vmatpush1.msra.mxu0 0.0
      %326 = vmatprep.subr.mxu0 0.0
      %327 = vmatpush1.msra.mxu0 0.0
      %328 = vmatprep.subr.mxu0 0.0
      %329 = vmatpush1.msra.mxu0 0.0
      %330 = vmatprep.subr.mxu0 0.0
      %331 = vmatpush1.msra.mxu0 0.0
      %332 = vmatprep.subr.mxu0 0.0
      %333 = vmatpush1.msra.mxu0 0.0
      %334 = vmatprep.subr.mxu0 0.0
      %335 = vmatpush1.msra.mxu0 0.0
      %336 = vmatprep.subr.mxu0 0.0
      %337 = vmatpush1.msra.mxu0 0.0
      %338 = vmatprep.subr.mxu0 0.0
      %339 = vmatpush1.msra.mxu0 0.0
      %340 = vmatprep.subr.mxu0 0.0
      %341 = vmatpush1.msra.mxu0 0.0
      %342 = vmatprep.subr.mxu0 0.0
      %343 = vmatpush1.msra.mxu0 0.0
      %344 = vmatprep.subr.mxu0 0.0
      %345 = vmatpush1.msra.mxu0 0.0
      %346 = vmatprep.subr.mxu0 0.0
      %347 = vmatpush1.msra.mxu0 0.0
      %348 = vmatprep.subr.mxu0 0.0
      %349 = vmatpush1.msra.mxu0 0.0
      %350 = vmatprep.subr.mxu0 0.0
      %351 = vmatpush1.msra.mxu0 0.0
      %352 = vmatprep.subr.mxu0 0.0
      %353 = vmatpush1.msra.mxu0 0.0
      %354 = vmatprep.subr.mxu0 0.0
      %355 = vmatpush1.msra.mxu0 0.0
      %356 = vmatprep.subr.mxu0 0.0
      %357 = vmatpush1.msra.mxu0 0.0
      %358 = vmatprep.subr.mxu0 0.0
      %359 = vmatpush1.msra.mxu0 0.0
      %360 = vmatprep.subr.mxu0 0.0
      %361 = vmatpush1.msra.mxu0 0.0
      %362 = vmatprep.subr.mxu0 0.0
      %363 = vmatpush1.msra.mxu0 0.0
      %364 = vmatprep.subr.mxu0 0.0
      %365 = vmatpush1.msra.mxu0 0.0
      %366 = vmatprep.subr.mxu0 0.0
      %367 = vmatpush1.msra.mxu0 0.0
      %368 = vmatprep.subr.mxu0 0.0
      %369 = vmatpush1.msra.mxu0 0.0
      %370 = vmatprep.subr.mxu0 0.0
      %371 = vmatpush1.msra.mxu0 0.0
      %372 = vmatprep.subr.mxu0 0.0
      %373 = vmatpush1.msra.mxu0 0.0
      %374 = vmatprep.mubr.f32.mxu0 0.0
      %375 = vmatmul.mubr.f32.gmra.mrb[0].mxu0 %v304
      %v376 = vpop.f32.mrb[0].mxu0
      %v377 = vadd.f32 0.0, %v376
      %v378 = vpop.f32.mrb[0].mxu0
      %379 = vdwg.mxu0
      %v380 = vmul.f32 %v377, 0.57735026
      %v381 = vld [vmem:[%s3] sm:$0x7]
      %v383 = vsel %vm302, %v381, 0
      %v386 = vsel %vm306, %v300, 0
      %388 = vmatprep.subr.mxu0 0.0
      %389 = vmatpush1.msra.mxu0 %v386
      %390 = vmatprep.subr.mxu0 0.0
      %391 = vmatpush1.msra.mxu0 0.0
      %392 = vmatprep.subr.mxu0 0.0
      %393 = vmatpush1.msra.mxu0 0.0
      %394 = vmatprep.subr.mxu0 0.0
      %395 = vmatpush1.msra.mxu0 0.0
      %396 = vmatprep.subr.mxu0 0.0
      %397 = vmatpush1.msra.mxu0 0.0
      %398 = vmatprep.subr.mxu0 0.0
      %399 = vmatpush1.msra.mxu0 0.0
      %400 = vmatprep.subr.mxu0 0.0
      %401 = vmatpush1.msra.mxu0 0.0
      %402 = vmatprep.subr.mxu0 0.0
      %403 = vmatpush1.msra.mxu0 0.0
      %404 = vmatprep.subr.mxu0 0.0
      %405 = vmatpush1.msra.mxu0 0.0
      %406 = vmatprep.subr.mxu0 0.0
      %407 = vmatpush1.msra.mxu0 0.0
      %408 = vmatprep.subr.mxu0 0.0
      %409 = vmatpush1.msra.mxu0 0.0
      %410 = vmatprep.subr.mxu0 0.0
      %411 = vmatpush1.msra.mxu0 0.0
      %412 = vmatprep.subr.mxu0 0.0
      %413 = vmatpush1.msra.mxu0 0.0
      %414 = vmatprep.subr.mxu0 0.0
      %415 = vmatpush1.msra.mxu0 0.0
      %416 = vmatprep.subr.mxu0 0.0
      %417 = vmatpush1.msra.mxu0 0.0
      %418 = vmatprep.subr.mxu0 0.0
      %419 = vmatpush1.msra.mxu0 0.0
      %420 = vmatprep.subr.mxu0 0.0
      %421 = vmatpush1.msra.mxu0 0.0
      %422 = vmatprep.subr.mxu0 0.0
      %423 = vmatpush1.msra.mxu0 0.0
      %424 = vmatprep.subr.mxu0 0.0
      %425 = vmatpush1.msra.mxu0 0.0
      %426 = vmatprep.subr.mxu0 0.0
      %427 = vmatpush1.msra.mxu0 0.0
      %428 = vmatprep.subr.mxu0 0.0
      %429 = vmatpush1.msra.mxu0 0.0
      %430 = vmatprep.subr.mxu0 0.0
      %431 = vmatpush1.msra.mxu0 0.0
      %432 = vmatprep.subr.mxu0 0.0
      %433 = vmatpush1.msra.mxu0 0.0
      %434 = vmatprep.subr.mxu0 0.0
      %435 = vmatpush1.msra.mxu0 0.0
      %436 = vmatprep.subr.mxu0 0.0
      %437 = vmatpush1.msra.mxu0 0.0
      %438 = vmatprep.subr.mxu0 0.0
      %439 = vmatpush1.msra.mxu0 0.0
      %440 = vmatprep.subr.mxu0 0.0
      %441 = vmatpush1.msra.mxu0 0.0
      %442 = vmatprep.subr.mxu0 0.0
      %443 = vmatpush1.msra.mxu0 0.0
      %444 = vmatprep.subr.mxu0 0.0
      %445 = vmatpush1.msra.mxu0 0.0
      %446 = vmatprep.subr.mxu0 0.0
      %447 = vmatpush1.msra.mxu0 0.0
      %448 = vmatprep.subr.mxu0 0.0
      %449 = vmatpush1.msra.mxu0 0.0
      %450 = vmatprep.subr.mxu0 0.0
      %451 = vmatpush1.msra.mxu0 0.0
      %452 = vmatprep.mubr.f32.mxu0 0.0
      %453 = vmatmul.mubr.f32.gmra.mrb[0].mxu0 %v383
      %v454 = vpop.f32.mrb[0].mxu0
      %v455 = vadd.f32 0.0, %v454
      %v456 = vpop.f32.mrb[0].mxu0
      %457 = vdwg.mxu0
      %v458 = vld [vmem:[%s4] sm:$0x7]
      %459 = vxpose.xlu0.b32.start [1/16] %v300, 128
      %460 = vxpose.xlu0.b32.cont [2/16] 0.0, 128
      %461 = vxpose.xlu0.b32.cont [3/16] 0.0, 128
      %462 = vxpose.xlu0.b32.cont [4/16] 0.0, 128
      %463 = vxpose.xlu0.b32.cont [5/16] 0.0, 128
      %464 = vxpose.xlu0.b32.cont [6/16] 0.0, 128
      %465 = vxpose.xlu0.b32.cont [7/16] 0.0, 128
      %466 = vxpose.xlu0.b32.cont [8/16] 0.0, 128
      %467 = vxpose.xlu0.b32.cont [9/16] 0.0, 128
      %468 = vxpose.xlu0.b32.cont [10/16] 0.0, 128
      %469 = vxpose.xlu0.b32.cont [11/16] 0.0, 128
      %470 = vxpose.xlu0.b32.cont [12/16] 0.0, 128
      %471 = vxpose.xlu0.b32.cont [13/16] 0.0, 128
      %472 = vxpose.xlu0.b32.cont [14/16] 0.0, 128
      %473 = vxpose.xlu0.b32.cont [15/16] 0.0, 128
      %474 = vxpose.xlu0.b32.end [16/16] 0.0, 128
      %v475 = vpop.trf.xlu0
      %v476 = vpop.trf.xlu0
      %v477 = vpop.trf.xlu0
      %v478 = vpop.trf.xlu0
      %v479 = vpop.trf.xlu0
      %v480 = vpop.trf.xlu0
      %v481 = vpop.trf.xlu0
      %v482 = vpop.trf.xlu0
      %v483 = vpop.trf.xlu0
      %v484 = vpop.trf.xlu0
      %v485 = vpop.trf.xlu0
      %v486 = vpop.trf.xlu0
      %v487 = vpop.trf.xlu0
      %v488 = vpop.trf.xlu0
      %v489 = vpop.trf.xlu0
      %v490 = vpop.trf.xlu0
      %v492 = vsel %vm302, %v475, 0
      %v495 = vsel %vm302, %v476, 0
      %v498 = vsel %vm302, %v458, 0
      %500 = vmatprep.subr.mxu0 0.0
      %501 = vmatpush1.xpose.msra.mxu0 %v498
      %502 = vmatprep.subr.mxu0 0.0
      %503 = vmatpush1.xpose.msra.mxu0 0.0
      %504 = vmatprep.subr.mxu0 0.0
      %505 = vmatpush1.xpose.msra.mxu0 0.0
      %506 = vmatprep.subr.mxu0 0.0
      %507 = vmatpush1.xpose.msra.mxu0 0.0
      %508 = vmatprep.subr.mxu0 0.0
      %509 = vmatpush1.xpose.msra.mxu0 0.0
      %510 = vmatprep.subr.mxu0 0.0
      %511 = vmatpush1.xpose.msra.mxu0 0.0
      %512 = vmatprep.subr.mxu0 0.0
      %513 = vmatpush1.xpose.msra.mxu0 0.0
      %514 = vmatprep.subr.mxu0 0.0
      %515 = vmatpush1.xpose.msra.mxu0 0.0
      %516 = vmatprep.subr.mxu0 0.0
      %517 = vmatpush1.xpose.msra.mxu0 0.0
      %518 = vmatprep.subr.mxu0 0.0
      %519 = vmatpush1.xpose.msra.mxu0 0.0
      %520 = vmatprep.subr.mxu0 0.0
      %521 = vmatpush1.xpose.msra.mxu0 0.0
      %522 = vmatprep.subr.mxu0 0.0
      %523 = vmatpush1.xpose.msra.mxu0 0.0
      %524 = vmatprep.subr.mxu0 0.0
      %525 = vmatpush1.xpose.msra.mxu0 0.0
      %526 = vmatprep.subr.mxu0 0.0
      %527 = vmatpush1.xpose.msra.mxu0 0.0
      %528 = vmatprep.subr.mxu0 0.0
      %529 = vmatpush1.xpose.msra.mxu0 0.0
      %530 = vmatprep.subr.mxu0 0.0
      %531 = vmatpush1.xpose.msra.mxu0 0.0
      %532 = vmatprep.subr.mxu0 0.0
      %533 = vmatpush1.xpose.msra.mxu0 0.0
      %534 = vmatprep.subr.mxu0 0.0
      %535 = vmatpush1.xpose.msra.mxu0 0.0
      %536 = vmatprep.subr.mxu0 0.0
      %537 = vmatpush1.xpose.msra.mxu0 0.0
      %538 = vmatprep.subr.mxu0 0.0
      %539 = vmatpush1.xpose.msra.mxu0 0.0
      %540 = vmatprep.subr.mxu0 0.0
      %541 = vmatpush1.xpose.msra.mxu0 0.0
      %542 = vmatprep.subr.mxu0 0.0
      %543 = vmatpush1.xpose.msra.mxu0 0.0
      %544 = vmatprep.subr.mxu0 0.0
      %545 = vmatpush1.xpose.msra.mxu0 0.0
      %546 = vmatprep.subr.mxu0 0.0
      %547 = vmatpush1.xpose.msra.mxu0 0.0
      %548 = vmatprep.subr.mxu0 0.0
      %549 = vmatpush1.xpose.msra.mxu0 0.0
      %550 = vmatprep.subr.mxu0 0.0
      %551 = vmatpush1.xpose.msra.mxu0 0.0
      %552 = vmatprep.subr.mxu0 0.0
      %553 = vmatpush1.xpose.msra.mxu0 0.0
      %554 = vmatprep.subr.mxu0 0.0
      %555 = vmatpush1.xpose.msra.mxu0 0.0
      %556 = vmatprep.subr.mxu0 0.0
      %557 = vmatpush1.xpose.msra.mxu0 0.0
      %558 = vmatprep.subr.mxu0 0.0
      %559 = vmatpush1.xpose.msra.mxu0 0.0
      %560 = vmatprep.subr.mxu0 0.0
      %561 = vmatpush1.xpose.msra.mxu0 0.0
      %562 = vmatprep.subr.mxu0 0.0
      %563 = vmatpush1.xpose.msra.mxu0 0.0
      %564 = vmatprep.mubr.f32.mxu0 0.0
      %565 = vmatmul.mubr.f32.gmra.mrb[0].mxu0 %v492
      %v566 = vpop.f32.mrb[0].mxu0
      %v567 = vadd.f32 0.0, %v566
      %v568 = vpop.f32.mrb[0].mxu0
      %569 = vmatprep.mubr.f32.mxu0 0.0
      %570 = vmatmul.mubr.f32.gmra.mrb[0].mxu0 %v495
      %v571 = vpop.f32.mrb[0].mxu0
      %v572 = vadd.f32 0.0, %v571
      %v573 = vpop.f32.mrb[0].mxu0
      %574 = vdwg.mxu0
      %v575 = vpack.c.bf16 %v380, %v380
      %v576 = vpack.c.bf16 %v455, %v455
      %577 = vxpose.xlu0.c.b16.start [1/8] %v575, 128
      %578 = vxpose.xlu0.c.b16.cont [2/8] 0, 128
      %579 = vxpose.xlu0.c.b16.cont [3/8] 0, 128
      %580 = vxpose.xlu0.c.b16.cont [4/8] 0, 128
      %581 = vxpose.xlu0.c.b16.cont [5/8] 0, 128
      %582 = vxpose.xlu0.c.b16.cont [6/8] 0, 128
      %583 = vxpose.xlu0.c.b16.cont [7/8] 0, 128
      %584 = vxpose.xlu0.c.b16.end [8/8] 0, 128
      %v585 = vpop.trf.xlu0
      %v586 = vpop.trf.xlu0
      %v587 = vpop.trf.xlu0
      %v588 = vpop.trf.xlu0
      %v589 = vpop.trf.xlu0
      %v590 = vpop.trf.xlu0
      %v591 = vpop.trf.xlu0
      %v592 = vpop.trf.xlu0
      %v594 = vsel %vm302, %v585, 0
      %vm596 = vcmask 1040384
      %vm597 = vcmask 1041408
      %v598 = vsel %vm596, 4294967295, 65535
      %v599 = vsel %vm597, %v598, 0
      %v601 = vand.u32 %v576, %v599
      %603 = vmatprep.subr.bf16.mxu0 0
      %604 = vmatpush1.bf16.msra.mxu0 %v601
      %605 = vmatprep.subr.bf16.mxu0 0
      %606 = vmatpush1.bf16.msra.mxu0 0
      %607 = vmatprep.subr.bf16.mxu0 0
      %608 = vmatpush1.bf16.msra.mxu0 0
      %609 = vmatprep.subr.bf16.mxu0 0
      %610 = vmatpush1.bf16.msra.mxu0 0
      %611 = vmatprep.subr.bf16.mxu0 0
      %612 = vmatpush1.bf16.msra.mxu0 0
      %613 = vmatprep.subr.bf16.mxu0 0
      %614 = vmatpush1.bf16.msra.mxu0 0
      %615 = vmatprep.subr.bf16.mxu0 0
      %616 = vmatpush1.bf16.msra.mxu0 0
      %617 = vmatprep.subr.bf16.mxu0 0
      %618 = vmatpush1.bf16.msra.mxu0 0
      %619 = vmatprep.subr.bf16.mxu0 0
      %620 = vmatpush1.bf16.msra.mxu0 0
      %621 = vmatprep.subr.bf16.mxu0 0
      %622 = vmatpush1.bf16.msra.mxu0 0
      %623 = vmatprep.subr.bf16.mxu0 0
      %624 = vmatpush1.bf16.msra.mxu0 0
      %625 = vmatprep.subr.bf16.mxu0 0
      %626 = vmatpush1.bf16.msra.mxu0 0
      %627 = vmatprep.subr.bf16.mxu0 0
      %628 = vmatpush1.bf16.msra.mxu0 0
      %629 = vmatprep.subr.bf16.mxu0 0
      %630 = vmatpush1.bf16.msra.mxu0 0
      %631 = vmatprep.subr.bf16.mxu0 0
      %632 = vmatpush1.bf16.msra.mxu0 0
      %633 = vmatprep.subr.bf16.mxu0 0
      %634 = vmatpush1.bf16.msra.mxu0 0
      %635 = vmatprep.mubr.bf16.mxu0 0
      %636 = vmatmul.mubr.bf16.gmra.mrb[0].mxu0 %v594
      %v637 = vpop.f32.mrb[0].mxu0
      %v638 = vadd.f32 0.0, %v637
      %v639 = vpop.f32.mrb[0].mxu0
      %v640 = vpop.f32.mrb[0].mxu0
      %v641 = vadd.f32 0.0, %v640
      %v642 = vpop.f32.mrb[0].mxu0
      %643 = vdwg.mxu0
      %v644 = vld [vmem:[#allocation2] sm:$0xff]
      %v645 = vld [vmem:[#allocation2 + $0x8] sm:$0xff]
      %vm646 = vcmask 130048
      %v647 = vsel %vm646, %v638, -inf
      %648 = vmax.xlane.f32.xlu0 %v647
      %v649 = vpop.xlane.xlu0 %648
      %v650 = vsel %vm646, %v641, -inf
      %651 = vmax.xlane.f32.xlu0 %v650
      %v652 = vpop.xlane.xlu0 %651
      %v653 = vmax.f32 %v644, %v649
      %v654 = vmax.f32 %v645, %v652
      %v655 = vsub.f32 %v644, %v653
      %v656 = vsub.f32 %v645, %v654
      %v657 = vmul.f32 %v655, 1.442695
      %v658 = vpow.pop %v657
      %v659 = vmul.f32 %v656, 1.442695
      %v660 = vpow.pop %v659
      %662 = vset.pattern.permute.xlu0 0
      %663 = vperm.xlu0 %662, %v653
      %v664 = vpop.permute.xlu0 %663
      %667 = vset.pattern.permute.xlu0 0
      %668 = vperm.xlu0 %667, %v654
      %v669 = vpop.permute.xlu0 %668
      %v671 = vsub.f32 %v638, %v664
      %v672 = vsub.f32 %v641, %v669
      %v673 = vmul.f32 %v671, 1.442695
      %v674 = vpow.pop %v673
      %v675 = vmul.f32 %v672, 1.442695
      %v676 = vpow.pop %v675
      %v677 = vld [vmem:[#allocation3] sm:$0xff]
      %v678 = vld [vmem:[#allocation3 + $0x8] sm:$0xff]
      %v679 = vmul.f32 %v658, %v677
      %v680 = vmul.f32 %v660, %v678
      %v681 = vsel %vm646, %v674, 0.0
      %682 = vadd.xlane.f32.xlu0 %v681
      %v683 = vpop.xlane.xlu0 %682
      %v684 = vsel %vm646, %v676, 0.0
      %685 = vadd.xlane.f32.xlu0 %v684
      %v686 = vpop.xlane.xlu0 %685
      %v687 = vadd.f32 %v679, %v683
      %v688 = vadd.f32 %v680, %v686
      %vm689 = vcmask 7168
      %690 = vst.msk [vmem:[#allocation3] sm:$0xff] %vm689, %v687
      %691 = vst.msk [vmem:[#allocation3 + $0x8] sm:$0xff] %vm689, %v688
      %v692 = vld [vmem:[#allocation4] sm:$0xff]
      %v693 = vld [vmem:[#allocation4 + $0x8] sm:$0xff]
      %695 = vset.pattern.permute.xlu0 0
      %696 = vperm.xlu0 %695, %v658
      %v697 = vpop.permute.xlu0 %696
      %700 = vset.pattern.permute.xlu0 0
      %701 = vperm.xlu0 %700, %v660
      %v702 = vpop.permute.xlu0 %701
      %v704 = vmul.f32 %v697, %v692
      %v705 = vmul.f32 %v702, %v693
      %v706 = vpack.c.bf16 %v676, %v674
      %v707 = vpack.c.bf16 %v572, %v567
      %v709 = vsel %vm646, %v706, 0
      %711 = vmatprep.subr.bf16.mxu0 0
      %712 = vmatpush1.bf16.msra.mxu0 %v707
      %713 = vmatprep.subr.bf16.mxu0 0
      %714 = vmatpush1.bf16.msra.mxu0 0
      %715 = vmatprep.subr.bf16.mxu0 0
      %716 = vmatpush1.bf16.msra.mxu0 0
      %717 = vmatprep.subr.bf16.mxu0 0
      %718 = vmatpush1.bf16.msra.mxu0 0
      %719 = vmatprep.subr.bf16.mxu0 0
      %720 = vmatpush1.bf16.msra.mxu0 0
      %721 = vmatprep.subr.bf16.mxu0 0
      %722 = vmatpush1.bf16.msra.mxu0 0
      %723 = vmatprep.subr.bf16.mxu0 0
      %724 = vmatpush1.bf16.msra.mxu0 0
      %725 = vmatprep.subr.bf16.mxu0 0
      %726 = vmatpush1.bf16.msra.mxu0 0
      %727 = vmatprep.subr.bf16.mxu0 0
      %728 = vmatpush1.bf16.msra.mxu0 0
      %729 = vmatprep.subr.bf16.mxu0 0
      %730 = vmatpush1.bf16.msra.mxu0 0
      %731 = vmatprep.subr.bf16.mxu0 0
      %732 = vmatpush1.bf16.msra.mxu0 0
      %733 = vmatprep.subr.bf16.mxu0 0
      %734 = vmatpush1.bf16.msra.mxu0 0
      %735 = vmatprep.subr.bf16.mxu0 0
      %736 = vmatpush1.bf16.msra.mxu0 0
      %737 = vmatprep.subr.bf16.mxu0 0
      %738 = vmatpush1.bf16.msra.mxu0 0
      %739 = vmatprep.subr.bf16.mxu0 0
      %740 = vmatpush1.bf16.msra.mxu0 0
      %741 = vmatprep.subr.bf16.mxu0 0
      %742 = vmatpush1.bf16.msra.mxu0 0
      %743 = vmatprep.mubr.bf16.mxu0 0
      %744 = vmatmul.mubr.bf16.gmra.mrb[0].mxu0 %v709
      %v745 = vpop.f32.mrb[0].mxu0
      %v746 = vadd.f32 0.0, %v745
      %v747 = vpop.f32.mrb[0].mxu0
      %v748 = vpop.f32.mrb[0].mxu0
      %v749 = vadd.f32 0.0, %v748
      %v750 = vpop.f32.mrb[0].mxu0
      %751 = vdwg.mxu0
      %v752 = vadd.f32 %v704, %v746
      %v753 = vadd.f32 %v705, %v749
      %754 = vst.msk [vmem:[#allocation4] sm:$0xff] %vm302, %v752
      %755 = vst.msk [vmem:[#allocation4 + $0x8] sm:$0xff] %vm302, %v753
      %756 = vst.msk [vmem:[#allocation2] sm:$0xff] %vm689, %v653
      %757 = vst.msk [vmem:[#allocation2 + $0x8] sm:$0xff] %vm689, %v654
      // Predicated region
      $region45: #{tpu_custom_call.1} parent=39 // pred_check
        %p758 = pneg %p287
      $region46: #{tpu_custom_call.1} parent=39 // pred_check_branch
        %760 = sbr.rel (%p758) target = $region48
      $region47: #{tpu_custom_call.1} parent=39 // pred_region
        %v761 = vld [vmem:[#allocation3] sm:$0xff]
        %v762 = vld [vmem:[#allocation3 + $0x8] sm:$0xff]
        %v763 = vrcp.pop %v761
        %v764 = vrcp.pop %v762
        %v765 = vld [vmem:[#allocation4] sm:$0xff]
        %v766 = vld [vmem:[#allocation4 + $0x8] sm:$0xff]
        %768 = vset.pattern.permute.xlu0 0
        %769 = vperm.xlu0 %768, %v763
        %v770 = vpop.permute.xlu0 %769
        %773 = vset.pattern.permute.xlu0 0
        %774 = vperm.xlu0 %773, %v764
        %v775 = vpop.permute.xlu0 %774
        %v777 = vmul.f32 %v765, %v770
        %v778 = vmul.f32 %v766, %v775
        %779 = vxpose.xlu0.b32.start [1/16] %v777, 128
        %780 = vxpose.xlu0.b32.cont [2/16] %v778, 128
        %781 = vxpose.xlu0.b32.cont [3/16] 0.0, 128
        %782 = vxpose.xlu0.b32.cont [4/16] 0.0, 128
        %783 = vxpose.xlu0.b32.cont [5/16] 0.0, 128
        %784 = vxpose.xlu0.b32.cont [6/16] 0.0, 128
        %785 = vxpose.xlu0.b32.cont [7/16] 0.0, 128
        %786 = vxpose.xlu0.b32.cont [8/16] 0.0, 128
        %787 = vxpose.xlu0.b32.cont [9/16] 0.0, 128
        %788 = vxpose.xlu0.b32.cont [10/16] 0.0, 128
        %789 = vxpose.xlu0.b32.cont [11/16] 0.0, 128
        %790 = vxpose.xlu0.b32.cont [12/16] 0.0, 128
        %791 = vxpose.xlu0.b32.cont [13/16] 0.0, 128
        %792 = vxpose.xlu0.b32.cont [14/16] 0.0, 128
        %793 = vxpose.xlu0.b32.cont [15/16] 0.0, 128
        %794 = vxpose.xlu0.b32.end [16/16] 0.0, 128
        %v795 = vpop.trf.xlu0
        %v796 = vpop.trf.xlu0
        %v797 = vpop.trf.xlu0
        %v798 = vpop.trf.xlu0
        %v799 = vpop.trf.xlu0
        %v800 = vpop.trf.xlu0
        %v801 = vpop.trf.xlu0
        %v802 = vpop.trf.xlu0
        %v803 = vpop.trf.xlu0
        %v804 = vpop.trf.xlu0
        %v805 = vpop.trf.xlu0
        %v806 = vpop.trf.xlu0
        %v807 = vpop.trf.xlu0
        %v808 = vpop.trf.xlu0
        %v809 = vpop.trf.xlu0
        %v810 = vpop.trf.xlu0
        %vm811 = vcmask 124928
        %812 = vst.msk [vmem:[%s285] sm:$0x7] %vm811, %v795
      $region48: #{tpu_custom_call.1} parent=39 // pred_fallthru
        _
      %p813 = scmp.lt.s32.totalorder %s21, 1
      %s814 = scalar_select %p813, %s21, 1
      %p815 = scmp.lt.s32.totalorder %s22, 0
      %s816 = scalar_select %p815, %s22, 0
      %s817 = sadd.s32 %s816, %s814
      %s818 = smul.addr %s817, 4
      %s819 = scalar_lea.vmem %s5, %s818
      // Predicated region
      $region49: #{tpu_custom_call.1} parent=39 // pred_check
        %p820 = pneg %p174
      $region50: #{tpu_custom_call.1} parent=39 // pred_check_branch
        %822 = sbr.rel (%p820) target = $region52
      $region51: #{tpu_custom_call.1} parent=39 // pred_region
        _
      $region52: #{tpu_custom_call.1} parent=39 // pred_fallthru
        _
    $region40: #{tpu_custom_call.1} parent=5 // pred_fallthru
      _
    %p823 = scmp.le.s32.totalorder 2, %s11
    // Predicated region
    $region53: #{tpu_custom_call.1} parent=5 // pred_check
      %p824 = pneg %p823
    $region54: #{tpu_custom_call.1} parent=5 // pred_check_branch
      %826 = sbr.rel (%p824) target = $region56
    $region55: #{tpu_custom_call.1} parent=5 // pred_region
      %s827 = ssub.s32 %s11, 2
      // Predicated region
      $region57: #{tpu_custom_call.1} parent=55 // pred_check
        %p828 = pneg %p180
      $region58: #{tpu_custom_call.1} parent=55 // pred_check_branch
        %830 = sbr.rel (%p828) target = $region60
      $region59: #{tpu_custom_call.1} parent=55 // pred_region
        %p831 = scmp.lt.s32.totalorder %s24, 1
        %s832 = scalar_select %p831, %s24, 1
        %p833 = scmp.lt.s32.totalorder %s25, 0
        %s834 = scalar_select %p833, %s25, 0
        %s835 = sadd.s32 %s834, %s832
        %s836 = smul.addr %s835, 4
        %s837 = scalar_lea.vmem %s5, %s836
      $region60: #{tpu_custom_call.1} parent=55 // pred_fallthru
        _
    $region56: #{tpu_custom_call.1} parent=5 // pred_fallthru
      _
  $region6: #{tpu_custom_call.1} parent=0 // loop_footer
    %s15 = sadd.s32 1, %s11
  $region7: #{tpu_custom_call.1} parent=0 // loop_footer_branch
    %10 = sbr.rel target = $region3
  $region8: #{tpu_custom_call.1} parent=0 // loop_exit
    _

</llo_original>
